<compile_context>
chip_gen: v6e
topology: v6e:2x2x1
jax: 0.10.0
libtpu: 0.0.40
codegen_flags: <defaults>
</compile_context>

<pallas_src>
import functools

import jax
import jax.numpy as jnp
from jax.experimental import pallas as pl
from jax.experimental.pallas import tpu as pltpu


# ----------------------------------------------------------------------------
# Pallas kernel: one (Bt, C, HWt) slab per grid step.
# ----------------------------------------------------------------------------
def _spatial_att_kernel(x_ref, w_ref, b_ref, o_ref, *, bt):
    # x_ref: (Bt, C, HWt) VMEM (native dtype)   w_ref: (1, C) VMEM (same dtype)
    # b_ref: (1, 1) SMEM f32                    o_ref: (Bt, HWt) VMEM
    bias = b_ref[0, 0]
    w = w_ref[...]
    # Bt is a small static int -> fully unrolled per-row MXU matvecs with
    # static indices; rows land in one (Bt, HWt) VMEM slab that is written
    # back to HBM as a single dense block.
    for i in range(bt):
        logit = jnp.dot(w, x_ref[i], preferred_element_type=jnp.float32)   # (1, HWt)
        o_ref[i:i + 1, :] = jax.nn.sigmoid(logit + bias).astype(o_ref.dtype)


# ----------------------------------------------------------------------------
# Tile sizing: ~2 MiB input block (Pallas double-buffers), far below the
# 64 MiB VMEM of v7x; Bt kept sublane-aligned whenever it tiles the batch.
# ----------------------------------------------------------------------------
def _tile_sizes(B, C, HW, itemsize):
    budget = 2 << 20
    HWt = HW
    Bt = max(1, min(B, budget // max(1, C * HW * itemsize), 64))
    if Bt < B:
        Bt = max(8, Bt - (Bt % 8))                 # sublane-dense output blocks
        if Bt * C * HWt * itemsize > 2 * budget:   # keep blocks bounded
            HWt = max(128, min(HW, (2 * budget // (Bt * C * itemsize)) // 128 * 128))
    return Bt, HWt


# ----------------------------------------------------------------------------
# Wrapper: trace-time weight folding + pallas_call plumbing (NCHW in/out).
# ----------------------------------------------------------------------------
def spatial_attention_v2_forward(x_nchw, params):
    """x_nchw: (B, C, H, W) -> attention map (B, 1, H, W) in x's dtype."""
    B, C, H, W = x_nchw.shape
    HW = H * W
    f32 = jnp.float32

    # Accept pre-squeezed (C,C)/(4C,) or PyTorch (C,C,1,1)/(1,4C,1,1) weights.
    w1 = jnp.asarray(params["conv1_w"], f32).reshape(C, C)
    b1 = jnp.asarray(params["conv1_b"], f32).reshape(C)
    wo = jnp.asarray(params["out_w"], f32).reshape(4 * C)
    bo = jnp.asarray(params["out_b"], f32).reshape(1)

    # Exact algebraic fold of out-conv(concat of 4 identical conv1 outputs).
    wo_eff = wo[0:C] + wo[C:2 * C] + wo[2 * C:3 * C] + wo[3 * C:4 * C]      # (C,)
    w_eff = (wo_eff @ w1).reshape(1, C).astype(x_nchw.dtype)                # (1, Cin)
    b_eff = (wo_eff @ b1 + bo[0]).reshape(1, 1).astype(f32)                 # SMEM scalar

    x = x_nchw.reshape(B, C, HW)          # contiguous reshape; keeps native dtype

    itemsize = jnp.dtype(x.dtype).itemsize
    Bt, HWt = _tile_sizes(B, C, HW, itemsize)
    grid_b, grid_hw = pl.cdiv(B, Bt), pl.cdiv(HW, HWt)
    Bp, HWp = grid_b * Bt, grid_hw * HWt
    if (Bp, HWp) != (B, HW):              # pad so blocks tile exactly (rare path)
        x = jnp.pad(x, ((0, Bp - B), (0, 0), (0, HWp - HW)))

    out = pl.pallas_call(
        functools.partial(_spatial_att_kernel, bt=Bt),
        out_shape=jax.ShapeDtypeStruct((Bp, HWp), x.dtype),
        grid_spec=pltpu.PrefetchScalarGridSpec(
            num_scalar_prefetch=0,
            grid=(grid_b, grid_hw),
            in_specs=[
                pl.BlockSpec((Bt, C, HWt), lambda i, j: (i, 0, j)),   # batched slab
                pl.BlockSpec((1, C), lambda i, j: (0, 0)),            # weights stay resident
                pl.BlockSpec(memory_space=pltpu.MemorySpace.SMEM),    # scalar bias
            ],
            out_specs=pl.BlockSpec((Bt, HWt), lambda i, j: (i, j)),   # sublane/lane-dense
        ),
        compiler_params=pltpu.CompilerParams(
            dimension_semantics=("parallel", "parallel"),  # shards on v7x's 2 TCs
            vmem_limit_bytes=32 * 1024 * 1024,
        ),
    )(x, w_eff, b_eff)

    return out[:B, :HW].reshape(B, 1, H, W)               # contiguous reshape back


# ----------------------------------------------------------------------------
# Pure-JAX reference mirroring the PyTorch module exactly (NCHW).
# ----------------------------------------------------------------------------
def spatial_attention_v2_reference(x, params):
    C = x.shape[1]
    w1, b1 = params["conv1_w"], params["conv1_b"]
    wo, bo = params["out_w"], params["out_b"]
    out1 = jnp.einsum("oc,bchw->bohw", w1, x) + b1[None, :, None, None]
    out_conc = jnp.concatenate([out1, out1, out1, out1], axis=1)
    out_temp = (jnp.einsum("oc,bchw->bohw", wo.reshape(1, 4 * C), out_conc)
                + bo[None, :, None, None])
    return jax.nn.sigmoid(out_temp)


# ----------------------------------------------------------------------------
if __name__ == "__main__":
    B, C, H, W = 2, 16, 16, 16
    key = jax.random.PRNGKey(0)
    kx, k1, k2, k3, k4 = jax.random.split(key, 5)
    x = jax.random.normal(kx, (B, C, H, W), jnp.float32)
    params = {
        "conv1_w": 0.2 * jax.random.normal(k1, (C, C), jnp.float32),
        "conv1_b": 0.2 * jax.random.normal(k2, (C,), jnp.float32),
        "out_w": 0.2 * jax.random.normal(k3, (4 * C,), jnp.float32),
        "out_b": 0.2 * jax.random.normal(k4, (1,), jnp.float32),
    }

    att = jax.block_until_ready(spatial_attention_v2_forward(x, params))
    ref = spatial_attention_v2_reference(x, params)
    assert att.shape == (B, 1, H, W)
    assert jnp.allclose(att, ref, atol=1e-4, rtol=1e-4), "attention mismatch"

    print("KERNEL_OK")
</pallas_src>

<mosaic_0001>
module attributes {stable_mosaic.version = 11 : i64} {
  func.func @_spatial_att_kernel(%arg0: i32, %arg1: i32, %arg2: memref<2x16x256xf32, #tpu.memory_space<vmem>>, %arg3: memref<1x16xf32, #tpu.memory_space<vmem>>, %arg4: memref<1x1xf32, #tpu.memory_space<smem>>, %arg5: memref<2x256xf32, #tpu.memory_space<vmem>>) attributes {dimension_semantics = [#tpu.dimension_semantics<parallel>, #tpu.dimension_semantics<parallel>], iteration_bounds = array<i64: 1, 1>, scalar_prefetch = 0 : i64, scratch_operands = 0 : i64, tpu.core_type = #tpu.core_type<tc>, window_params = [{transform_indices = @transform_0, window_bounds = array<i64: 2, 16, 256>}, {pipeline_mode = #tpu.pipeline_mode<synchronous>, transform_indices = @transform_1, window_bounds = array<i64: 1, 16>}, {transform_indices = @transform_2, window_bounds = array<i64: 1, 1>}, {transform_indices = @transform_3, window_bounds = array<i64: 2, 256>}]} {
    %c0 = arith.constant 0 : index
    %c0_0 = arith.constant 0 : index
    %0 = memref.load %arg4[%c0, %c0_0] : memref<1x1xf32, #tpu.memory_space<smem>>
    %c0_1 = arith.constant 0 : index
    %c0_2 = arith.constant 0 : index
    %1 = vector.load %arg3[%c0_1, %c0_2] : memref<1x16xf32, #tpu.memory_space<vmem>>, vector<1x16xf32>
    %c0_3 = arith.constant 0 : index
    %c0_4 = arith.constant 0 : index
    %c0_5 = arith.constant 0 : index
    %2 = vector.load %arg2[%c0_3, %c0_4, %c0_5] : memref<2x16x256xf32, #tpu.memory_space<vmem>>, vector<1x16x256xf32>
    %3 = vector.shape_cast %2 : vector<1x16x256xf32> to vector<16x256xf32>
    %cst = arith.constant dense<0.000000e+00> : vector<1x256xf32>
    %4 = tpu.matmul %1, %3, %cst {dimension_numbers = #tpu.dot_dimension_numbers<[1], [0], [0], [1], [0, 0, 1, 1], [], []>} : vector<1x16xf32>, vector<16x256xf32>, vector<1x256xf32> -> vector<1x256xf32>
    %5 = vector.broadcast %0 : f32 to vector<1x256xf32>
    %6 = arith.addf %4, %5 : vector<1x256xf32>
    %7 = arith.negf %6 : vector<1x256xf32>
    %8 = math.exp %7 : vector<1x256xf32>
    %cst_6 = arith.constant 1.000000e+00 : f32
    %9 = vector.broadcast %cst_6 : f32 to vector<1x256xf32>
    %10 = arith.addf %9, %8 : vector<1x256xf32>
    %11 = arith.divf %9, %10 : vector<1x256xf32>
    %c0_7 = arith.constant 0 : index
    %c0_8 = arith.constant 0 : index
    %12 = vector.load %arg5[%c0_7, %c0_8] : memref<2x256xf32, #tpu.memory_space<vmem>>, vector<1x256xf32>
    tpu.vector_store %arg5[%c0_7, %c0_8], %11 {strides = array<i32>} : memref<2x256xf32, #tpu.memory_space<vmem>>, vector<1x256xf32>,
    %c1 = arith.constant 1 : index
    %c0_9 = arith.constant 0 : index
    %c0_10 = arith.constant 0 : index
    %13 = vector.load %arg2[%c1, %c0_9, %c0_10] : memref<2x16x256xf32, #tpu.memory_space<vmem>>, vector<1x16x256xf32>
    %14 = vector.shape_cast %13 : vector<1x16x256xf32> to vector<16x256xf32>
    %cst_11 = arith.constant dense<0.000000e+00> : vector<1x256xf32>
    %15 = tpu.matmul %1, %14, %cst_11 {dimension_numbers = #tpu.dot_dimension_numbers<[1], [0], [0], [1], [0, 0, 1, 1], [], []>} : vector<1x16xf32>, vector<16x256xf32>, vector<1x256xf32> -> vector<1x256xf32>
    %16 = vector.broadcast %0 : f32 to vector<1x256xf32>
    %17 = arith.addf %15, %16 : vector<1x256xf32>
    %18 = arith.negf %17 : vector<1x256xf32>
    %19 = math.exp %18 : vector<1x256xf32>
    %cst_12 = arith.constant 1.000000e+00 : f32
    %20 = vector.broadcast %cst_12 : f32 to vector<1x256xf32>
    %21 = arith.addf %20, %19 : vector<1x256xf32>
    %22 = arith.divf %20, %21 : vector<1x256xf32>
    %c1_13 = arith.constant 1 : index
    %c0_14 = arith.constant 0 : index
    %23 = vector.load %arg5[%c1_13, %c0_14] : memref<2x256xf32, #tpu.memory_space<vmem>>, vector<1x256xf32>
    tpu.vector_store %arg5[%c1_13, %c0_14], %22 {strides = array<i32>} : memref<2x256xf32, #tpu.memory_space<vmem>>, vector<1x256xf32>,
    return
  }
  func.func @transform_0(%arg0: i32, %arg1: i32) -> (i32, i32, i32) {
    %c0_i32 = arith.constant 0 : i32
    %c0_i32_0 = arith.constant 0 : i32
    return %arg0, %c0_i32, %arg1 : i32, i32, i32
  }
  func.func @transform_1(%arg0: i32, %arg1: i32) -> (i32, i32) {
    %c0_i32 = arith.constant 0 : i32
    %c0_i32_0 = arith.constant 0 : i32
    %c0_i32_1 = arith.constant 0 : i32
    return %c0_i32, %c0_i32_0 : i32, i32
  }
  func.func @transform_2(%arg0: i32, %arg1: i32) -> (i32, i32) {
    %c0_i32 = arith.constant 0 : i32
    %c0_i32_0 = arith.constant 0 : i32
    %c0_i32_1 = arith.constant 0 : i32
    return %c0_i32, %c0_i32_0 : i32, i32
  }
  func.func @transform_3(%arg0: i32, %arg1: i32) -> (i32, i32) {
    %c0_i32 = arith.constant 0 : i32
    return %arg0, %arg1 : i32, i32
  }
}

</mosaic_0001>

<llo_original>
// kernel: tpu_custom_call.1
$region0: #{tpu_custom_call.1}
  #allocation0 [shape = 'u32[]', space=smem, size = 0x4, offset = 0x4, fixed_abs, tag = 'smem constant byte address 0x4 - core index']
  #allocation1 [shape = 'u32[144,128]{1,0:T(1,128)}', space=vmem, size = 0x12000, scoped, tag = 'internal scratch']
  #allocation2 [shape = 'f32[1,1]{1,0:T(1,128)S(6)}', space=smem, size = 0x200, scoped, tag = 'scoped memory for tpu_custom_call.1']
  %s0 = inlined_call_operand.hbm [shape: f32[2,16,256], index: 0, kind: input, shape index: {}]
  %s1 = inlined_call_operand.vmem [shape: f32[1,16], index: 1, kind: input, shape index: {}]
  %s2 = inlined_call_operand.<no memory space> [shape: f32[1,1], index: 2, kind: input, shape index: {}]
  %s3 = inlined_call_operand.hbm [shape: f32[2,256], index: 3, kind: output, shape index: {}]
  %s4 = sld [smem:[#allocation0]]
  $region26: #{tpu_custom_call.1} parent=0
    _
  %s6 = ssub.s32 1, %s4
  %s7 = scalar_select 0, %s6, %s4
  %8 = sst [smem:[#allocation2]] %s2
  $region1: #{tpu_custom_call.1} parent=0
    #allocation3 [shape = 'u8[32768]{0}', space=vmem, size = 0x8000, scoped, tag = 'input window, operand 0, single buffered']
    #allocation4 [shape = 's32[1]{0}', space=sflag, size = 0x4, scoped, tag = 'scoped memory for tpu_custom_call.1']
    #allocation5 [shape = 's32[1]{0}', space=sflag, size = 0x4, scoped, tag = 'scoped memory for tpu_custom_call.1']
    #allocation6 [shape = 'u8[2048]{0}', space=vmem, size = 0x800, scoped, tag = 'output window, operand 0, single buffered']
    %9 = vsyncpa [#allocation4], 0
    %10 = vsyncpa [#allocation5], 0
    // Predicated region
    $region2: #{tpu_custom_call.1} parent=1 // pred_check
      _
    $region3: #{tpu_custom_call.1} parent=1 // pred_check_branch
      %12 = sbr.rel (0) target = $region5
    $region4: #{tpu_custom_call.1} parent=1 // pred_region
      %s14 = ssub.s32 1024, 1024
      %15 = vsyncadd [#allocation4], %s14
      %s16 = sshll.u32 [#allocation3], 4
      %s17 = int_to_ptr.vmem [resolvable:$true] %s16
      %22 = dma.hbm_to_vmem [thread:$0]  %s0, 1024, %s17, [#allocation4], 256, 256, 16
    $region5: #{tpu_custom_call.1} parent=1 // pred_fallthru
      _
    // Predicated region
    $region6: #{tpu_custom_call.1} parent=1 // pred_check
      _
    $region7: #{tpu_custom_call.1} parent=1 // pred_check_branch
      %24 = sbr.rel (0) target = $region9
    $region8: #{tpu_custom_call.1} parent=1 // pred_region
      _
    $region9: #{tpu_custom_call.1} parent=1 // pred_fallthru
      _
    // Predicated region
    $region10: #{tpu_custom_call.1} parent=1 // pred_check
      _
    $region11: #{tpu_custom_call.1} parent=1 // pred_check_branch
      %26 = sbr.rel (0) target = $region13
    $region12: #{tpu_custom_call.1} parent=1 // pred_region
      _
    $region13: #{tpu_custom_call.1} parent=1 // pred_fallthru
      _
    // Predicated region
    $region14: #{tpu_custom_call.1} parent=1 // pred_check
      _
    $region15: #{tpu_custom_call.1} parent=1 // pred_check_branch
      %28 = sbr.rel (0) target = $region17
    $region16: #{tpu_custom_call.1} parent=1 // pred_region
      %29 = dma.done [#allocation4], 1024
    $region17: #{tpu_custom_call.1} parent=1 // pred_fallthru
      _
    %s30 = sld [smem:[#allocation2]]
    %v31 = vld [vmem:[%s1] sm:$0x1]
    %v32 = vld [vmem:[#allocation3] sm:$0xff]
    %v33 = vld [vmem:[#allocation3 + $0x8] sm:$0xff]
    %v34 = vld [vmem:[#allocation3 + $0x10] sm:$0xff]
    %v35 = vld [vmem:[#allocation3 + $0x18] sm:$0xff]
    %v36 = vstv %s30
    %vm37 = vcmask 130048
    %v39 = vsel %vm37, %v31, 0
    %41 = vmatprep.subr.mxu0 0.0
    %42 = vmatpush1.msra.mxu0 0.0
    %43 = vmatprep.subr.mxu0 0.0
    %44 = vmatpush1.msra.mxu0 0.0
    %45 = vmatprep.subr.mxu0 0.0
    %46 = vmatpush1.msra.mxu0 0.0
    %47 = vmatprep.subr.mxu0 0.0
    %48 = vmatpush1.msra.mxu0 0.0
    %49 = vmatprep.subr.mxu0 0.0
    %50 = vmatpush1.msra.mxu0 0.0
    %51 = vmatprep.subr.mxu0 0.0
    %52 = vmatpush1.msra.mxu0 0.0
    %53 = vmatprep.subr.mxu0 0.0
    %54 = vmatpush1.msra.mxu0 0.0
    %55 = vmatprep.subr.mxu0 0.0
    %56 = vmatpush1.msra.mxu0 0.0
    %57 = vmatprep.subr.mxu0 0.0
    %58 = vmatpush1.msra.mxu0 0.0
    %59 = vmatprep.subr.mxu0 0.0
    %60 = vmatpush1.msra.mxu0 0.0
    %61 = vmatprep.subr.mxu0 0.0
    %62 = vmatpush1.msra.mxu0 0.0
    %63 = vmatprep.subr.mxu0 0.0
    %64 = vmatpush1.msra.mxu0 0.0
    %65 = vmatprep.subr.mxu0 0.0
    %66 = vmatpush1.msra.mxu0 0.0
    %67 = vmatprep.subr.mxu0 0.0
    %68 = vmatpush1.msra.mxu0 0.0
    %69 = vmatprep.subr.mxu0 %v35
    %70 = vmatpush1.msra.mxu0 %v34
    %71 = vmatprep.subr.mxu0 %v33
    %72 = vmatpush1.msra.mxu0 %v32
    %73 = vmatprep.subr.mxu0 0.0
    %74 = vmatpush2.msra.mxu0 0.0
    %75 = vmatprep.subr.mxu0 0.0
    %76 = vmatpush2.msra.mxu0 0.0
    %77 = vmatprep.subr.mxu0 0.0
    %78 = vmatpush2.msra.mxu0 0.0
    %79 = vmatprep.subr.mxu0 0.0
    %80 = vmatpush2.msra.mxu0 0.0
    %81 = vmatprep.subr.mxu0 0.0
    %82 = vmatpush2.msra.mxu0 0.0
    %83 = vmatprep.subr.mxu0 0.0
    %84 = vmatpush2.msra.mxu0 0.0
    %85 = vmatprep.subr.mxu0 0.0
    %86 = vmatpush2.msra.mxu0 0.0
    %87 = vmatprep.subr.mxu0 0.0
    %88 = vmatpush2.msra.mxu0 0.0
    %89 = vmatprep.subr.mxu0 0.0
    %90 = vmatpush2.msra.mxu0 0.0
    %91 = vmatprep.subr.mxu0 0.0
    %92 = vmatpush2.msra.mxu0 0.0
    %93 = vmatprep.subr.mxu0 0.0
    %94 = vmatpush2.msra.mxu0 0.0
    %95 = vmatprep.subr.mxu0 0.0
    %96 = vmatpush2.msra.mxu0 0.0
    %97 = vmatprep.subr.mxu0 0.0
    %98 = vmatpush2.msra.mxu0 0.0
    %99 = vmatprep.subr.mxu0 0.0
    %100 = vmatpush2.msra.mxu0 0.0
    %101 = vmatprep.subr.mxu0 0.0
    %102 = vmatpush2.msra.mxu0 0.0
    %103 = vmatprep.subr.mxu0 0.0
    %104 = vmatpush2.msra.mxu0 0.0
    %105 = vmatprep.mubr.f32.mxu0 0.0
    %106 = vmatmul.mubr.f32.gmra.mxu0 %v39
    %v107 = vpop.f32.mrf.mxu0
    %v108 = vadd.f32 %v36, %v107
    %v109 = vpop.f32.mrf.mxu0
    %v110 = vadd.f32 %v36, %v109
    %111 = vdwg.mxu0
    %v112 = vxor.u32 %v108, 2147483648
    %v113 = vxor.u32 %v110, 2147483648
    %v114 = vmul.f32 %v112, 1.442695
    %v115 = vpow.pop %v114
    %v116 = vmul.f32 %v113, 1.442695
    %v117 = vpow.pop %v116
    %v118 = vadd.f32 %v115, 1.0
    %v119 = vadd.f32 %v117, 1.0
    %v120 = vrcp.pop %v118
    %v121 = vmul.f32 1.0, %v120
    %v122 = vrcp.pop %v119
    %v123 = vmul.f32 1.0, %v122
    %v126 = vcombine.low %v121, %v123
    %v128 = vunpack.c.l.s4 1966171168
    %v129 = vunpack.c.0.s8 %v128
    %v130 = vlaneseq
    %v131 = vshrl.u32 %v130, 7
    %v132 = vsub.s32 %v129, %v131
    %v133 = vrot.slane %v126, %v132
    %v135 = vunpack.c.l.s4 1966171168
    %v136 = vunpack.c.0.s8 %v135
    %v137 = vlaneseq
    %v138 = vshrl.u32 %v137, 7
    %v139 = vsub.s32 %v136, %v138
    %v140 = vrot.slane %v133, %v139
    %v142 = vlaneseq
    %vm143 = vcmp.ge.s32.totalorder %v142, 0
    %vm144 = vcmp.lt.s32.totalorder %v142, 256
    %vm145 = vmand %vm143, %vm144
    %146 = vst.msk [vmem:[#allocation6] ss:$2 sm:$0x3] %vm145, %v140
    %s147 = scalar_lea.vmem [#allocation3], 32
    %v148 = vld [vmem:[%s147] sm:$0xff]
    %v149 = vld [vmem:[%s147 + $0x8] sm:$0xff]
    %v150 = vld [vmem:[%s147 + $0x10] sm:$0xff]
    %v151 = vld [vmem:[%s147 + $0x18] sm:$0xff]
    %152 = vmatprep.subr.mxu0 0.0
    %153 = vmatpush1.msra.mxu0 0.0
    %154 = vmatprep.subr.mxu0 0.0
    %155 = vmatpush1.msra.mxu0 0.0
    %156 = vmatprep.subr.mxu0 0.0
    %157 = vmatpush1.msra.mxu0 0.0
    %158 = vmatprep.subr.mxu0 0.0
    %159 = vmatpush1.msra.mxu0 0.0
    %160 = vmatprep.subr.mxu0 0.0
    %161 = vmatpush1.msra.mxu0 0.0
    %162 = vmatprep.subr.mxu0 0.0
    %163 = vmatpush1.msra.mxu0 0.0
    %164 = vmatprep.subr.mxu0 0.0
    %165 = vmatpush1.msra.mxu0 0.0
    %166 = vmatprep.subr.mxu0 0.0
    %167 = vmatpush1.msra.mxu0 0.0
    %168 = vmatprep.subr.mxu0 0.0
    %169 = vmatpush1.msra.mxu0 0.0
    %170 = vmatprep.subr.mxu0 0.0
    %171 = vmatpush1.msra.mxu0 0.0
    %172 = vmatprep.subr.mxu0 0.0
    %173 = vmatpush1.msra.mxu0 0.0
    %174 = vmatprep.subr.mxu0 0.0
    %175 = vmatpush1.msra.mxu0 0.0
    %176 = vmatprep.subr.mxu0 0.0
    %177 = vmatpush1.msra.mxu0 0.0
    %178 = vmatprep.subr.mxu0 0.0
    %179 = vmatpush1.msra.mxu0 0.0
    %180 = vmatprep.subr.mxu0 %v151
    %181 = vmatpush1.msra.mxu0 %v150
    %182 = vmatprep.subr.mxu0 %v149
    %183 = vmatpush1.msra.mxu0 %v148
    %184 = vmatprep.subr.mxu0 0.0
    %185 = vmatpush2.msra.mxu0 0.0
    %186 = vmatprep.subr.mxu0 0.0
    %187 = vmatpush2.msra.mxu0 0.0
    %188 = vmatprep.subr.mxu0 0.0
    %189 = vmatpush2.msra.mxu0 0.0
    %190 = vmatprep.subr.mxu0 0.0
    %191 = vmatpush2.msra.mxu0 0.0
    %192 = vmatprep.subr.mxu0 0.0
    %193 = vmatpush2.msra.mxu0 0.0
    %194 = vmatprep.subr.mxu0 0.0
    %195 = vmatpush2.msra.mxu0 0.0
    %196 = vmatprep.subr.mxu0 0.0
    %197 = vmatpush2.msra.mxu0 0.0
    %198 = vmatprep.subr.mxu0 0.0
    %199 = vmatpush2.msra.mxu0 0.0
    %200 = vmatprep.subr.mxu0 0.0
    %201 = vmatpush2.msra.mxu0 0.0
    %202 = vmatprep.subr.mxu0 0.0
    %203 = vmatpush2.msra.mxu0 0.0
    %204 = vmatprep.subr.mxu0 0.0
    %205 = vmatpush2.msra.mxu0 0.0
    %206 = vmatprep.subr.mxu0 0.0
    %207 = vmatpush2.msra.mxu0 0.0
    %208 = vmatprep.subr.mxu0 0.0
    %209 = vmatpush2.msra.mxu0 0.0
    %210 = vmatprep.subr.mxu0 0.0
    %211 = vmatpush2.msra.mxu0 0.0
    %212 = vmatprep.subr.mxu0 0.0
    %213 = vmatpush2.msra.mxu0 0.0
    %214 = vmatprep.subr.mxu0 0.0
    %215 = vmatpush2.msra.mxu0 0.0
    %216 = vmatprep.mubr.f32.mxu0 0.0
    %217 = vmatmul.mubr.f32.gmra.mxu0 %v39
    %v218 = vpop.f32.mrf.mxu0
    %v219 = vadd.f32 %v36, %v218
    %v220 = vpop.f32.mrf.mxu0
    %v221 = vadd.f32 %v36, %v220
    %222 = vdwg.mxu0
    %v223 = vxor.u32 %v219, 2147483648
    %v224 = vxor.u32 %v221, 2147483648
    %v225 = vmul.f32 %v223, 1.442695
    %v226 = vpow.pop %v225
    %v227 = vmul.f32 %v224, 1.442695
    %v228 = vpow.pop %v227
    %v229 = vadd.f32 %v226, 1.0
    %v230 = vadd.f32 %v228, 1.0
    %v231 = vrcp.pop %v229
    %v232 = vmul.f32 1.0, %v231
    %v233 = vrcp.pop %v230
    %v234 = vmul.f32 1.0, %v233
    %v237 = vcombine.low %v232, %v234
    %v239 = vunpack.c.l.s4 1966171168
    %v240 = vunpack.c.0.s8 %v239
    %v241 = vlaneseq
    %v242 = vshrl.u32 %v241, 7
    %v243 = vsub.s32 %v240, %v242
    %v244 = vrot.slane %v237, %v243
    %v246 = vunpack.c.l.s4 1966171168
    %v247 = vunpack.c.0.s8 %v246
    %v248 = vlaneseq
    %v249 = vshrl.u32 %v248, 7
    %v250 = vsub.s32 %v247, %v249
    %v251 = vrot.slane %v244, %v250
    %s253 = scalar_lea.vmem [#allocation6], 1
    %254 = vst.msk [vmem:[%s253] ss:$2 sm:$0x3] %vm145, %v251
    // Predicated region
    $region18: #{tpu_custom_call.1} parent=1 // pred_check
      _
    $region19: #{tpu_custom_call.1} parent=1 // pred_check_branch
      %256 = sbr.rel (0) target = $region21
    $region20: #{tpu_custom_call.1} parent=1 // pred_region
      %s258 = ssub.s32 64, 64
      %259 = vsyncadd [#allocation5], %s258
      %s261 = sshll.u32 [#allocation6], 4
      %s262 = int_to_ptr.vmem [resolvable:$true] %s261
      %264 = dma.vmem_to_hbm [thread:$0]  %s262, 64, %s3, [#allocation5]
    $region21: #{tpu_custom_call.1} parent=1 // pred_fallthru
      _
    // Predicated region
    $region22: #{tpu_custom_call.1} parent=1 // pred_check
      _
    $region23: #{tpu_custom_call.1} parent=1 // pred_check_branch
      %266 = sbr.rel (0) target = $region25
    $region24: #{tpu_custom_call.1} parent=1 // pred_region
      %267 = dma.done [#allocation5], 64
    $region25: #{tpu_custom_call.1} parent=1 // pred_fallthru
      _
    %268 = vsyncpa [#allocation4], 1
    %269 = vsyncpa [#allocation5], 1

</llo_original>
